<compile_context>
chip_gen: v6e
topology: v6e:2x2x1
jax: 0.10.0
libtpu: 0.0.40
codegen_flags: <defaults>
</compile_context>

<pallas_src>
import functools

import jax
import jax.numpy as jnp
from jax.experimental import pallas as pl
from jax.experimental.pallas import tpu as pltpu

_SUBLANE = 8            # sublane granularity for the batch tile
_MIN_SPLIT_ROWS = 1024  # split a single-tile batch in two above this many rows


def _round_up(x, m):
    return ((x + m - 1) // m) * m


def _actor_kernel(x_ref, w1_ref, b1_ref, w2_ref, b2_ref, w3_ref, b3_ref,
                  logp_ref):
    # Weights are pre-transposed to (in, out). Activations are cast to the
    # weight dtype only at the MXU boundary; accumulation and all VPU/EUP math
    # (tanh, exp, log) stay in float32.
    w_dtype = w1_ref.dtype
    x = x_ref[...].astype(w_dtype)

    h1 = jnp.tanh(
        jnp.dot(x, w1_ref[...], preferred_element_type=jnp.float32)
        + b1_ref[...]
    )
    h2 = jnp.tanh(
        jnp.dot(h1.astype(w_dtype), w2_ref[...],
                preferred_element_type=jnp.float32)
        + b2_ref[...]
    )
    logits = (
        jnp.dot(h2.astype(w_dtype), w3_ref[...],
                preferred_element_type=jnp.float32)
        + b3_ref[...]
    )

    # Categorical(logits=...): log-softmax over the (narrow) action axis.
    m = jnp.max(logits, axis=-1, keepdims=True)
    shifted = logits - m
    sum_e = jnp.sum(jnp.exp(shifted), axis=-1, keepdims=True)
    logp_ref[...] = (shifted - jnp.log(sum_e)).astype(logp_ref.dtype)


def prepare_params(params, dtype=jnp.float32):
    """One-time layout prep: transpose weights to (in, out), biases to (1, out).

    Input dict uses PyTorch nn.Linear layout:
      w1 (fc1, in), b1 (fc1,), w2 (fc2, fc1), b2 (fc2,),
      w3 (n_actions, fc2), b3 (n_actions,)

    dtype=jnp.bfloat16 halves weight DMA / VMEM bytes and feeds the MXU bf16
    path on v6e / v7x; keep float32 on v5e (no bf16 VPU/EUP) or when exact
    parity with the f32 PyTorch module is required. Biases stay float32.
    """
    return dict(
        w1=params["w1"].T.astype(dtype),
        b1=params["b1"].reshape(1, -1).astype(jnp.float32),
        w2=params["w2"].T.astype(dtype),
        b2=params["b2"].reshape(1, -1).astype(jnp.float32),
        w3=params["w3"].T.astype(dtype),
        b3=params["b3"].reshape(1, -1).astype(jnp.float32),
    )


def _xla_forward(state, w1, b1, w2, b2, w3, b3):
    f32 = jnp.float32
    h1 = jnp.tanh(state.astype(f32) @ w1.astype(f32) + b1)
    h2 = jnp.tanh(h1 @ w2.astype(f32) + b2)
    logits = h2 @ w3.astype(f32) + b3
    return jax.nn.log_softmax(logits, axis=-1)


@functools.partial(
    jax.jit, static_argnames=("max_block_b", "small_batch_xla_threshold"))
def discrete_actor_log_probs(state, w1, b1, w2, b2, w3, b3, *,
                             max_block_b=2048, small_batch_xla_threshold=0):
    """Fused actor MLP + log-softmax (== Categorical(logits).logits).

    Args:
      state: (B, input_dims) float32.
      w1..b3: prepared params (prepare_params output), (in, out) weights.
      max_block_b: upper bound on the batch tile (multiple of 8).
      small_batch_xla_threshold: if B <= threshold, use plain XLA instead of
        Pallas (fixed pallas_call setup dominates tiny batches). 0 = never.
    Returns:
      log_probs: (B, n_actions) float32.  probs = jnp.exp(log_probs).
    """
    B, in_dims = state.shape
    fc1 = w1.shape[1]
    fc2 = w2.shape[1]
    n_actions = w3.shape[1]

    if B <= small_batch_xla_threshold:
        return _xla_forward(state, w1, b1, w2, b2, w3, b3)

    # Batch tile: multiple of 8 sublanes, capped. If the whole batch would be
    # one large tile, split it in two so v7x megacore (2 TCs) has >= 2 grid
    # steps to shard over the "parallel" batch axis.
    bp0 = _round_up(B, _SUBLANE)
    tb = min(max_block_b, bp0)
    if tb == bp0 and bp0 >= _MIN_SPLIT_ROWS:
        tb = _round_up((bp0 + 1) // 2, _SUBLANE)
    bp = _round_up(B, tb)
    if bp != B:
        state = jnp.pad(state, ((0, bp - B), (0, 0)))

    grid = (bp // tb,)

    # Only set a VMEM limit if the (double-buffered) block footprint could
    # exceed the conservative default scoped budget (16 MiB on v5e).
    wbytes = jnp.dtype(w1.dtype).itemsize
    sbytes = jnp.dtype(state.dtype).itemsize
    est = (2 * tb * in_dims * sbytes                       # input blocks
           + 2 * tb * n_actions * 4                        # output blocks
           + 2 * wbytes * (in_dims * fc1 + fc1 * fc2 + fc2 * n_actions)
           + 2 * 4 * (fc1 + fc2 + n_actions))              # biases
    vmem_limit = None
    if est > 12 * 1024 * 1024:
        vmem_limit = min(int(est * 3 // 2) + (4 << 20), 48 << 20)

    batched = lambda shape: pl.BlockSpec(shape, lambda i: (i, 0))
    resident = lambda shape: pl.BlockSpec(shape, lambda i: (0, 0))

    logp_pad = pl.pallas_call(
        _actor_kernel,
        out_shape=jax.ShapeDtypeStruct((bp, n_actions), jnp.float32),
        grid=grid,
        in_specs=[
            batched((tb, in_dims)),
            resident((in_dims, fc1)),
            resident((1, fc1)),
            resident((fc1, fc2)),
            resident((1, fc2)),
            resident((fc2, n_actions)),
            resident((1, n_actions)),
        ],
        out_specs=batched((tb, n_actions)),
        compiler_params=pltpu.CompilerParams(
            dimension_semantics=("parallel",),
            vmem_limit_bytes=vmem_limit),
    )(state, w1, b1, w2, b2, w3, b3)

    # Slice fuses inside this jit (no extra HBM round-trip of the padded rows).
    return logp_pad[:B]


def discrete_actor_forward(state, prepared, **kwargs):
    """Convenience wrapper returning (log_probs, probs) like Categorical."""
    logp = discrete_actor_log_probs(
        state, prepared["w1"], prepared["b1"], prepared["w2"], prepared["b2"],
        prepared["w3"], prepared["b3"], **kwargs)
    return logp, jnp.exp(logp)


def init_params(key, input_dims, fc1_dims, fc2_dims, n_actions):
    """Deterministic init mimicking nn.Linear (uniform +-1/sqrt(fan_in))."""
    ks = jax.random.split(key, 6)

    def linear(kw, kb, out_f, in_f):
        bound = 1.0 / jnp.sqrt(jnp.float32(in_f))
        w = jax.random.uniform(kw, (out_f, in_f), jnp.float32, -bound, bound)
        b = jax.random.uniform(kb, (1, out_f), jnp.float32, -bound, bound)
        return w, b

    w1, b1 = linear(ks[0], ks[1], fc1_dims, input_dims)
    w2, b2 = linear(ks[2], ks[3], fc2_dims, fc1_dims)
    w3, b3 = linear(ks[4], ks[5], n_actions, fc2_dims)
    return dict(w1=w1, b1=b1, w2=w2, b2=b2, w3=w3, b3=b3)


def reference_forward(state, params):
    """Pure-JAX reference of the PyTorch forward (returns dist.logits, probs)."""
    h1 = jnp.tanh(state @ params["w1"].T + params["b1"])
    h2 = jnp.tanh(h1 @ params["w2"].T + params["b2"])
    logits = h2 @ params["w3"].T + params["b3"]
    logp = jax.nn.log_softmax(logits, axis=-1)
    return logp, jnp.exp(logp)


if __name__ == "__main__":
    key = jax.random.PRNGKey(0)
    k_param, k_s1, k_s2, k_s3 = jax.random.split(key, 4)

    batch = 8
    input_dims = 32
    fc1_dims = 128
    fc2_dims = 128
    n_actions = 8

    params = init_params(k_param, input_dims, fc1_dims, fc2_dims, n_actions)
    prepared = prepare_params(params)                 # one-time layout prep

    # Small batch (single tile).
    state = jax.random.normal(k_s1, (batch, input_dims), jnp.float32)
    log_probs, probs = discrete_actor_forward(state, prepared)
    log_probs = jax.block_until_ready(log_probs)
    probs = jax.block_until_ready(probs)

    ref_logp, ref_probs = reference_forward(state, params)
    assert log_probs.shape == (batch, n_actions)
    assert jnp.allclose(log_probs, ref_logp, atol=1e-4, rtol=1e-4)
    assert jnp.allclose(probs, ref_probs, atol=1e-5, rtol=1e-4)
    assert jnp.allclose(jnp.sum(probs, axis=-1), 1.0, atol=1e-5)

    # Ragged batch (exercises batch padding + fused slicing path).
    state2 = jax.random.normal(k_s2, (20, input_dims), jnp.float32)
    lp2, p2 = discrete_actor_forward(state2, prepared)
    lp2 = jax.block_until_ready(lp2)
    ref_lp2, ref_p2 = reference_forward(state2, params)
    assert lp2.shape == (20, n_actions)
    assert jnp.allclose(lp2, ref_lp2, atol=1e-4, rtol=1e-4)
    assert jnp.allclose(p2, ref_p2, atol=1e-5, rtol=1e-4)

    # Larger batch (exercises tile split -> grid >= 2 for megacore sharding).
    state3 = jax.random.normal(k_s3, (1040, input_dims), jnp.float32)
    lp3, _ = discrete_actor_forward(state3, prepared)
    lp3 = jax.block_until_ready(lp3)
    ref_lp3, _ = reference_forward(state3, params)
    assert lp3.shape == (1040, n_actions)
    assert jnp.allclose(lp3, ref_lp3, atol=1e-4, rtol=1e-4)

    # Optional bf16-weight path (bf16 MXU operands, f32 accumulation/softmax).
    prepared_bf16 = prepare_params(params, dtype=jnp.bfloat16)
    lp_bf, _ = discrete_actor_forward(state, prepared_bf16)
    lp_bf = jax.block_until_ready(lp_bf)
    assert jnp.allclose(lp_bf, ref_logp, atol=5e-2, rtol=5e-2)

    # TODO(synk): optimizer / checkpoint save-load / Categorical sampling are
    # host-side concerns and are intentionally not part of the kernel.
    print("KERNEL_OK")
</pallas_src>

<mosaic_0001>
module attributes {stable_mosaic.version = 11 : i64} {
  func.func @_actor_kernel(%arg0: i32, %arg1: memref<8x32xf32, #tpu.memory_space<vmem>>, %arg2: memref<32x128xf32, #tpu.memory_space<vmem>>, %arg3: memref<1x128xf32, #tpu.memory_space<vmem>>, %arg4: memref<128x128xf32, #tpu.memory_space<vmem>>, %arg5: memref<1x128xf32, #tpu.memory_space<vmem>>, %arg6: memref<128x8xf32, #tpu.memory_space<vmem>>, %arg7: memref<1x8xf32, #tpu.memory_space<vmem>>, %arg8: memref<8x8xf32, #tpu.memory_space<vmem>>) attributes {dimension_semantics = [#tpu.dimension_semantics<parallel>], iteration_bounds = array<i64: 1>, scalar_prefetch = 0 : i64, scratch_operands = 0 : i64, tpu.core_type = #tpu.core_type<tc>, window_params = [{transform_indices = @transform_0, window_bounds = array<i64: 8, 32>}, {pipeline_mode = #tpu.pipeline_mode<synchronous>, transform_indices = @transform_1, window_bounds = array<i64: 32, 128>}, {pipeline_mode = #tpu.pipeline_mode<synchronous>, transform_indices = @transform_2, window_bounds = array<i64: 1, 128>}, {pipeline_mode = #tpu.pipeline_mode<synchronous>, transform_indices = @transform_3, window_bounds = array<i64: 128, 128>}, {pipeline_mode = #tpu.pipeline_mode<synchronous>, transform_indices = @transform_4, window_bounds = array<i64: 1, 128>}, {pipeline_mode = #tpu.pipeline_mode<synchronous>, transform_indices = @transform_5, window_bounds = array<i64: 128, 8>}, {pipeline_mode = #tpu.pipeline_mode<synchronous>, transform_indices = @transform_6, window_bounds = array<i64: 1, 8>}, {transform_indices = @transform_7, window_bounds = array<i64: 8, 8>}]} {
    %c0 = arith.constant 0 : index
    %c0_0 = arith.constant 0 : index
    %0 = vector.load %arg1[%c0, %c0_0] : memref<8x32xf32, #tpu.memory_space<vmem>>, vector<8x32xf32>
    %c0_1 = arith.constant 0 : index
    %c0_2 = arith.constant 0 : index
    %1 = vector.load %arg2[%c0_1, %c0_2] : memref<32x128xf32, #tpu.memory_space<vmem>>, vector<32x128xf32>
    %cst = arith.constant dense<0.000000e+00> : vector<8x128xf32>
    %2 = tpu.matmul %0, %1, %cst {dimension_numbers = #tpu.dot_dimension_numbers<[1], [0], [0], [1], [0, 0, 1, 1], [], []>} : vector<8x32xf32>, vector<32x128xf32>, vector<8x128xf32> -> vector<8x128xf32>
    %c0_3 = arith.constant 0 : index
    %c0_4 = arith.constant 0 : index
    %3 = vector.load %arg3[%c0_3, %c0_4] : memref<1x128xf32, #tpu.memory_space<vmem>>, vector<1x128xf32>
    %4 = vector.broadcast %3 : vector<1x128xf32> to vector<8x128xf32>
    %5 = arith.addf %2, %4 : vector<8x128xf32>
    %6 = math.tanh %5 : vector<8x128xf32>
    %c0_5 = arith.constant 0 : index
    %c0_6 = arith.constant 0 : index
    %7 = vector.load %arg4[%c0_5, %c0_6] : memref<128x128xf32, #tpu.memory_space<vmem>>, vector<128x128xf32>
    %cst_7 = arith.constant dense<0.000000e+00> : vector<8x128xf32>
    %8 = tpu.matmul %6, %7, %cst_7 {dimension_numbers = #tpu.dot_dimension_numbers<[1], [0], [0], [1], [0, 0, 1, 1], [], []>} : vector<8x128xf32>, vector<128x128xf32>, vector<8x128xf32> -> vector<8x128xf32>
    %c0_8 = arith.constant 0 : index
    %c0_9 = arith.constant 0 : index
    %9 = vector.load %arg5[%c0_8, %c0_9] : memref<1x128xf32, #tpu.memory_space<vmem>>, vector<1x128xf32>
    %10 = vector.broadcast %9 : vector<1x128xf32> to vector<8x128xf32>
    %11 = arith.addf %8, %10 : vector<8x128xf32>
    %12 = math.tanh %11 : vector<8x128xf32>
    %c0_10 = arith.constant 0 : index
    %c0_11 = arith.constant 0 : index
    %13 = vector.load %arg6[%c0_10, %c0_11] : memref<128x8xf32, #tpu.memory_space<vmem>>, vector<128x8xf32>
    %cst_12 = arith.constant dense<0.000000e+00> : vector<8x8xf32>
    %14 = tpu.matmul %12, %13, %cst_12 {dimension_numbers = #tpu.dot_dimension_numbers<[1], [0], [0], [1], [0, 0, 1, 1], [], []>} : vector<8x128xf32>, vector<128x8xf32>, vector<8x8xf32> -> vector<8x8xf32>
    %c0_13 = arith.constant 0 : index
    %c0_14 = arith.constant 0 : index
    %15 = vector.load %arg7[%c0_13, %c0_14] : memref<1x8xf32, #tpu.memory_space<vmem>>, vector<1x8xf32>
    %16 = vector.broadcast %15 : vector<1x8xf32> to vector<8x8xf32>
    %17 = arith.addf %14, %16 : vector<8x8xf32>
    %cst_15 = arith.constant dense<0xFF800000> : vector<8xf32>
    %18 = vector.multi_reduction <maximumf>, %17, %cst_15 [1] : vector<8x8xf32> to vector<8xf32>
    %19 = vector.shape_cast %18 : vector<8xf32> to vector<8x1xf32>
    %20 = vector.broadcast %19 : vector<8x1xf32> to vector<8x8xf32>
    %21 = arith.subf %17, %20 : vector<8x8xf32>
    %22 = math.exp %21 : vector<8x8xf32>
    %cst_16 = arith.constant dense<0.000000e+00> : vector<8xf32>
    %23 = vector.multi_reduction <add>, %22, %cst_16 [1] : vector<8x8xf32> to vector<8xf32>
    %24 = vector.shape_cast %23 : vector<8xf32> to vector<8x1xf32>
    %25 = math.log %24 : vector<8x1xf32>
    %26 = vector.broadcast %25 : vector<8x1xf32> to vector<8x8xf32>
    %27 = arith.subf %21, %26 : vector<8x8xf32>
    %c0_17 = arith.constant 0 : index
    %c0_18 = arith.constant 0 : index
    %28 = vector.load %arg8[%c0_17, %c0_18] : memref<8x8xf32, #tpu.memory_space<vmem>>, vector<8x8xf32>
    tpu.vector_store %arg8[%c0_17, %c0_18], %27 {strides = array<i32>} : memref<8x8xf32, #tpu.memory_space<vmem>>, vector<8x8xf32>,
    return
  }
  func.func @transform_0(%arg0: i32) -> (i32, i32) {
    %c0_i32 = arith.constant 0 : i32
    %c0_i32_0 = arith.constant 0 : i32
    return %arg0, %c0_i32 : i32, i32
  }
  func.func @transform_1(%arg0: i32) -> (i32, i32) {
    %c0_i32 = arith.constant 0 : i32
    %c0_i32_0 = arith.constant 0 : i32
    %c0_i32_1 = arith.constant 0 : i32
    return %c0_i32, %c0_i32_0 : i32, i32
  }
  func.func @transform_2(%arg0: i32) -> (i32, i32) {
    %c0_i32 = arith.constant 0 : i32
    %c0_i32_0 = arith.constant 0 : i32
    %c0_i32_1 = arith.constant 0 : i32
    return %c0_i32, %c0_i32_0 : i32, i32
  }
  func.func @transform_3(%arg0: i32) -> (i32, i32) {
    %c0_i32 = arith.constant 0 : i32
    %c0_i32_0 = arith.constant 0 : i32
    %c0_i32_1 = arith.constant 0 : i32
    return %c0_i32, %c0_i32_0 : i32, i32
  }
  func.func @transform_4(%arg0: i32) -> (i32, i32) {
    %c0_i32 = arith.constant 0 : i32
    %c0_i32_0 = arith.constant 0 : i32
    %c0_i32_1 = arith.constant 0 : i32
    return %c0_i32, %c0_i32_0 : i32, i32
  }
  func.func @transform_5(%arg0: i32) -> (i32, i32) {
    %c0_i32 = arith.constant 0 : i32
    %c0_i32_0 = arith.constant 0 : i32
    %c0_i32_1 = arith.constant 0 : i32
    return %c0_i32, %c0_i32_0 : i32, i32
  }
  func.func @transform_6(%arg0: i32) -> (i32, i32) {
    %c0_i32 = arith.constant 0 : i32
    %c0_i32_0 = arith.constant 0 : i32
    %c0_i32_1 = arith.constant 0 : i32
    return %c0_i32, %c0_i32_0 : i32, i32
  }
  func.func @transform_7(%arg0: i32) -> (i32, i32) {
    %c0_i32 = arith.constant 0 : i32
    %c0_i32_0 = arith.constant 0 : i32
    return %arg0, %c0_i32 : i32, i32
  }
}

</mosaic_0001>

<llo_original>
// kernel: discrete_actor_log_probs.1
$region0: #{discrete_actor_log_probs.1}
  #allocation0 [shape = 'u32[]', space=smem, size = 0x4, offset = 0x4, fixed_abs, tag = 'smem constant byte address 0x4 - core index']
  #allocation1 [shape = 'u32[144,128]{1,0:T(1,128)}', space=vmem, size = 0x12000, scoped, tag = 'internal scratch']
  %s0 = inlined_call_operand.vmem [shape: f32[8,32], index: 0, kind: input, shape index: {}]
  %s1 = inlined_call_operand.hbm [shape: f32[32,128], index: 1, kind: input, shape index: {}]
  %s2 = inlined_call_operand.vmem [shape: f32[1,128], index: 2, kind: input, shape index: {}]
  %s3 = inlined_call_operand.vmem [shape: f32[128,128], index: 3, kind: input, shape index: {}]
  %s4 = inlined_call_operand.hbm [shape: f32[1,128], index: 4, kind: input, shape index: {}]
  %s5 = inlined_call_operand.vmem [shape: f32[128,8], index: 5, kind: input, shape index: {}]
  %s6 = inlined_call_operand.vmem [shape: f32[1,8], index: 6, kind: input, shape index: {}]
  %s7 = inlined_call_operand.hbm [shape: f32[8,8], index: 7, kind: output, shape index: {}]
  %s8 = sld [smem:[#allocation0]]
  $region46: #{discrete_actor_log_probs.1} parent=0
    _
  %s10 = ssub.s32 1, %s8
  %s11 = scalar_select 0, %s10, %s8
  $region1: #{discrete_actor_log_probs.1} parent=0
    #allocation2 [shape = 'u8[16384]{0}', space=vmem, size = 0x4000, scoped, tag = 'input window, operand 1, single buffered']
    #allocation3 [shape = 's32[1]{0}', space=sflag, size = 0x4, scoped, tag = 'scoped memory for discrete_actor_log_probs.1']
    #allocation4 [shape = 's32[1]{0}', space=sflag, size = 0x4, scoped, tag = 'scoped memory for discrete_actor_log_probs.1']
    #allocation5 [shape = 'u8[512]{0}', space=vmem, size = 0x400, scoped, tag = 'input window, operand 4, single buffered']
    #allocation6 [shape = 's32[1]{0}', space=sflag, size = 0x4, scoped, tag = 'scoped memory for discrete_actor_log_probs.1']
    #allocation7 [shape = 'u8[4096]{0}', space=vmem, size = 0x1000, scoped, tag = 'output window, operand 0, single buffered']
    %12 = vsyncpa [#allocation3], 0
    %13 = vsyncpa [#allocation6], 0
    %14 = vsyncpa [#allocation4], 0
    // Predicated region
    $region2: #{discrete_actor_log_probs.1} parent=1 // pred_check
      _
    $region3: #{discrete_actor_log_probs.1} parent=1 // pred_check_branch
      %16 = sbr.rel (0) target = $region5
    $region4: #{discrete_actor_log_probs.1} parent=1 // pred_region
      _
    $region5: #{discrete_actor_log_probs.1} parent=1 // pred_fallthru
      _
    // Predicated region
    $region6: #{discrete_actor_log_probs.1} parent=1 // pred_check
      _
    $region7: #{discrete_actor_log_probs.1} parent=1 // pred_check_branch
      %18 = sbr.rel (0) target = $region9
    $region8: #{discrete_actor_log_probs.1} parent=1 // pred_region
      %s20 = ssub.s32 512, 512
      %21 = vsyncadd [#allocation3], %s20
      %s22 = sshll.u32 [#allocation2], 4
      %s23 = int_to_ptr.vmem [resolvable:$true] %s22
      %28 = dma.hbm_to_vmem [thread:$0]  %s1, 512, %s23, [#allocation3], 128, 128, 8
    $region9: #{discrete_actor_log_probs.1} parent=1 // pred_fallthru
      _
    // Predicated region
    $region10: #{discrete_actor_log_probs.1} parent=1 // pred_check
      _
    $region11: #{discrete_actor_log_probs.1} parent=1 // pred_check_branch
      %30 = sbr.rel (0) target = $region13
    $region12: #{discrete_actor_log_probs.1} parent=1 // pred_region
      _
    $region13: #{discrete_actor_log_probs.1} parent=1 // pred_fallthru
      _
    // Predicated region
    $region14: #{discrete_actor_log_probs.1} parent=1 // pred_check
      _
    $region15: #{discrete_actor_log_probs.1} parent=1 // pred_check_branch
      %32 = sbr.rel (0) target = $region17
    $region16: #{discrete_actor_log_probs.1} parent=1 // pred_region
      _
    $region17: #{discrete_actor_log_probs.1} parent=1 // pred_fallthru
      _
    // Predicated region
    $region18: #{discrete_actor_log_probs.1} parent=1 // pred_check
      _
    $region19: #{discrete_actor_log_probs.1} parent=1 // pred_check_branch
      %34 = sbr.rel (0) target = $region21
    $region20: #{discrete_actor_log_probs.1} parent=1 // pred_region
      %s36 = ssub.s32 16, 16
      %37 = vsyncadd [#allocation6], %s36
      %s39 = sshll.u32 [#allocation5], 4
      %s40 = int_to_ptr.vmem [resolvable:$true] %s39
      %42 = dma.hbm_to_vmem [thread:$0]  %s4, 16, %s40, [#allocation6]
    $region21: #{discrete_actor_log_probs.1} parent=1 // pred_fallthru
      _
    // Predicated region
    $region22: #{discrete_actor_log_probs.1} parent=1 // pred_check
      _
    $region23: #{discrete_actor_log_probs.1} parent=1 // pred_check_branch
      %44 = sbr.rel (0) target = $region25
    $region24: #{discrete_actor_log_probs.1} parent=1 // pred_region
      _
    $region25: #{discrete_actor_log_probs.1} parent=1 // pred_fallthru
      _
    // Predicated region
    $region26: #{discrete_actor_log_probs.1} parent=1 // pred_check
      _
    $region27: #{discrete_actor_log_probs.1} parent=1 // pred_check_branch
      %46 = sbr.rel (0) target = $region29
    $region28: #{discrete_actor_log_probs.1} parent=1 // pred_region
      _
    $region29: #{discrete_actor_log_probs.1} parent=1 // pred_fallthru
      _
    // Predicated region
    $region30: #{discrete_actor_log_probs.1} parent=1 // pred_check
      _
    $region31: #{discrete_actor_log_probs.1} parent=1 // pred_check_branch
      %48 = sbr.rel (0) target = $region33
    $region32: #{discrete_actor_log_probs.1} parent=1 // pred_region
      %49 = dma.done [#allocation3], 512
    $region33: #{discrete_actor_log_probs.1} parent=1 // pred_fallthru
      _
    // Predicated region
    $region34: #{discrete_actor_log_probs.1} parent=1 // pred_check
      _
    $region35: #{discrete_actor_log_probs.1} parent=1 // pred_check_branch
      %51 = sbr.rel (0) target = $region37
    $region36: #{discrete_actor_log_probs.1} parent=1 // pred_region
      %52 = dma.done [#allocation6], 16
    $region37: #{discrete_actor_log_probs.1} parent=1 // pred_fallthru
      _
    %v53 = vld [vmem:[%s0] sm:$0xff]
    %v54 = vld [vmem:[#allocation2] sm:$0xff]
    %v55 = vld [vmem:[#allocation2 + $0x8] sm:$0xff]
    %v56 = vld [vmem:[#allocation2 + $0x10] sm:$0xff]
    %v57 = vld [vmem:[#allocation2 + $0x18] sm:$0xff]
    %v58 = vld [vmem:[%s2] sm:$0x1]
    %v60 = vlaneseq
    %v61 = vshrl.u32 %v60, 7
    %v62 = vsub.s32 0, %v61
    %v63 = vrot.slane %v58, %v62
    %vm65 = vcmask 261120
    %v67 = vsel %vm65, %v53, 0
    %69 = vmatprep.subr.mxu0 0.0
    %70 = vmatpush1.msra.mxu0 0.0
    %71 = vmatprep.subr.mxu0 0.0
    %72 = vmatpush1.msra.mxu0 0.0
    %73 = vmatprep.subr.mxu0 0.0
    %74 = vmatpush1.msra.mxu0 0.0
    %75 = vmatprep.subr.mxu0 0.0
    %76 = vmatpush1.msra.mxu0 0.0
    %77 = vmatprep.subr.mxu0 0.0
    %78 = vmatpush1.msra.mxu0 0.0
    %79 = vmatprep.subr.mxu0 0.0
    %80 = vmatpush1.msra.mxu0 0.0
    %81 = vmatprep.subr.mxu0 0.0
    %82 = vmatpush1.msra.mxu0 0.0
    %83 = vmatprep.subr.mxu0 0.0
    %84 = vmatpush1.msra.mxu0 0.0
    %85 = vmatprep.subr.mxu0 0.0
    %86 = vmatpush1.msra.mxu0 0.0
    %87 = vmatprep.subr.mxu0 0.0
    %88 = vmatpush1.msra.mxu0 0.0
    %89 = vmatprep.subr.mxu0 0.0
    %90 = vmatpush1.msra.mxu0 0.0
    %91 = vmatprep.subr.mxu0 0.0
    %92 = vmatpush1.msra.mxu0 0.0
    %93 = vmatprep.subr.mxu0 0.0
    %94 = vmatpush1.msra.mxu0 %v57
    %95 = vmatprep.subr.mxu0 0.0
    %96 = vmatpush1.msra.mxu0 %v56
    %97 = vmatprep.subr.mxu0 0.0
    %98 = vmatpush1.msra.mxu0 %v55
    %99 = vmatprep.subr.mxu0 0.0
    %100 = vmatpush1.msra.mxu0 %v54
    %101 = vmatprep.subr.mxu0 0.0
    %102 = vmatpush2.msra.mxu0 0.0
    %103 = vmatprep.subr.mxu0 0.0
    %104 = vmatpush2.msra.mxu0 0.0
    %105 = vmatprep.subr.mxu0 0.0
    %106 = vmatpush2.msra.mxu0 0.0
    %107 = vmatprep.subr.mxu0 0.0
    %108 = vmatpush2.msra.mxu0 0.0
    %109 = vmatprep.subr.mxu0 0.0
    %110 = vmatpush2.msra.mxu0 0.0
    %111 = vmatprep.subr.mxu0 0.0
    %112 = vmatpush2.msra.mxu0 0.0
    %113 = vmatprep.subr.mxu0 0.0
    %114 = vmatpush2.msra.mxu0 0.0
    %115 = vmatprep.subr.mxu0 0.0
    %116 = vmatpush2.msra.mxu0 0.0
    %117 = vmatprep.subr.mxu0 0.0
    %118 = vmatpush2.msra.mxu0 0.0
    %119 = vmatprep.subr.mxu0 0.0
    %120 = vmatpush2.msra.mxu0 0.0
    %121 = vmatprep.subr.mxu0 0.0
    %122 = vmatpush2.msra.mxu0 0.0
    %123 = vmatprep.subr.mxu0 0.0
    %124 = vmatpush2.msra.mxu0 0.0
    %125 = vmatprep.subr.mxu0 0.0
    %126 = vmatpush2.msra.mxu0 0.0
    %127 = vmatprep.subr.mxu0 0.0
    %128 = vmatpush2.msra.mxu0 0.0
    %129 = vmatprep.subr.mxu0 0.0
    %130 = vmatpush2.msra.mxu0 0.0
    %131 = vmatprep.subr.mxu0 0.0
    %132 = vmatpush2.msra.mxu0 0.0
    %133 = vmatprep.mubr.f32.mxu0 0.0
    %134 = vmatmul.mubr.f32.gmra.mxu0 %v67
    %v135 = vpop.f32.mrf.mxu0
    %v136 = vadd.f32 %v63, %v135
    %v137 = vpop.f32.mrf.mxu0
    %138 = vdwg.mxu0
    %v139 = vtanh.pop %v136
    %v140 = vld [vmem:[%s3] sm:$0xff]
    %v141 = vld [vmem:[%s3 + $0x8] sm:$0xff]
    %v142 = vld [vmem:[%s3 + $0x10] sm:$0xff]
    %v143 = vld [vmem:[%s3 + $0x18] sm:$0xff]
    %v144 = vld [vmem:[%s3 + $0x20] sm:$0xff]
    %v145 = vld [vmem:[%s3 + $0x28] sm:$0xff]
    %v146 = vld [vmem:[%s3 + $0x30] sm:$0xff]
    %v147 = vld [vmem:[%s3 + $0x38] sm:$0xff]
    %v148 = vld [vmem:[%s3 + $0x40] sm:$0xff]
    %v149 = vld [vmem:[%s3 + $0x48] sm:$0xff]
    %v150 = vld [vmem:[%s3 + $0x50] sm:$0xff]
    %v151 = vld [vmem:[%s3 + $0x58] sm:$0xff]
    %v152 = vld [vmem:[%s3 + $0x60] sm:$0xff]
    %v153 = vld [vmem:[%s3 + $0x68] sm:$0xff]
    %v154 = vld [vmem:[%s3 + $0x70] sm:$0xff]
    %v155 = vld [vmem:[%s3 + $0x78] sm:$0xff]
    %v156 = vld [vmem:[#allocation5] sm:$0x1]
    %v158 = vlaneseq
    %v159 = vshrl.u32 %v158, 7
    %v160 = vsub.s32 0, %v159
    %v161 = vrot.slane %v156, %v160
    %163 = vmatprep.subr.mxu0 0.0
    %164 = vmatpush1.msra.mxu0 %v155
    %165 = vmatprep.subr.mxu0 0.0
    %166 = vmatpush1.msra.mxu0 %v154
    %167 = vmatprep.subr.mxu0 0.0
    %168 = vmatpush1.msra.mxu0 %v153
    %169 = vmatprep.subr.mxu0 0.0
    %170 = vmatpush1.msra.mxu0 %v152
    %171 = vmatprep.subr.mxu0 0.0
    %172 = vmatpush1.msra.mxu0 %v151
    %173 = vmatprep.subr.mxu0 0.0
    %174 = vmatpush1.msra.mxu0 %v150
    %175 = vmatprep.subr.mxu0 0.0
    %176 = vmatpush1.msra.mxu0 %v149
    %177 = vmatprep.subr.mxu0 0.0
    %178 = vmatpush1.msra.mxu0 %v148
    %179 = vmatprep.subr.mxu0 0.0
    %180 = vmatpush1.msra.mxu0 %v147
    %181 = vmatprep.subr.mxu0 0.0
    %182 = vmatpush1.msra.mxu0 %v146
    %183 = vmatprep.subr.mxu0 0.0
    %184 = vmatpush1.msra.mxu0 %v145
    %185 = vmatprep.subr.mxu0 0.0
    %186 = vmatpush1.msra.mxu0 %v144
    %187 = vmatprep.subr.mxu0 0.0
    %188 = vmatpush1.msra.mxu0 %v143
    %189 = vmatprep.subr.mxu0 0.0
    %190 = vmatpush1.msra.mxu0 %v142
    %191 = vmatprep.subr.mxu0 0.0
    %192 = vmatpush1.msra.mxu0 %v141
    %193 = vmatprep.subr.mxu0 0.0
    %194 = vmatpush1.msra.mxu0 %v140
    %195 = vmatprep.subr.mxu0 0.0
    %196 = vmatpush2.msra.mxu0 0.0
    %197 = vmatprep.subr.mxu0 0.0
    %198 = vmatpush2.msra.mxu0 0.0
    %199 = vmatprep.subr.mxu0 0.0
    %200 = vmatpush2.msra.mxu0 0.0
    %201 = vmatprep.subr.mxu0 0.0
    %202 = vmatpush2.msra.mxu0 0.0
    %203 = vmatprep.subr.mxu0 0.0
    %204 = vmatpush2.msra.mxu0 0.0
    %205 = vmatprep.subr.mxu0 0.0
    %206 = vmatpush2.msra.mxu0 0.0
    %207 = vmatprep.subr.mxu0 0.0
    %208 = vmatpush2.msra.mxu0 0.0
    %209 = vmatprep.subr.mxu0 0.0
    %210 = vmatpush2.msra.mxu0 0.0
    %211 = vmatprep.subr.mxu0 0.0
    %212 = vmatpush2.msra.mxu0 0.0
    %213 = vmatprep.subr.mxu0 0.0
    %214 = vmatpush2.msra.mxu0 0.0
    %215 = vmatprep.subr.mxu0 0.0
    %216 = vmatpush2.msra.mxu0 0.0
    %217 = vmatprep.subr.mxu0 0.0
    %218 = vmatpush2.msra.mxu0 0.0
    %219 = vmatprep.subr.mxu0 0.0
    %220 = vmatpush2.msra.mxu0 0.0
    %221 = vmatprep.subr.mxu0 0.0
    %222 = vmatpush2.msra.mxu0 0.0
    %223 = vmatprep.subr.mxu0 0.0
    %224 = vmatpush2.msra.mxu0 0.0
    %225 = vmatprep.subr.mxu0 0.0
    %226 = vmatpush2.msra.mxu0 0.0
    %227 = vmatprep.mubr.f32.mxu0 0.0
    %228 = vmatmul.mubr.f32.gmra.mxu0 %v139
    %v229 = vpop.f32.mrf.mxu0
    %v230 = vadd.f32 %v161, %v229
    %v231 = vpop.f32.mrf.mxu0
    %232 = vdwg.mxu0
    %v233 = vtanh.pop %v230
    %v234 = vld [vmem:[%s5] sm:$0xff]
    %v235 = vld [vmem:[%s5 + $0x8] sm:$0xff]
    %v236 = vld [vmem:[%s5 + $0x10] sm:$0xff]
    %v237 = vld [vmem:[%s5 + $0x18] sm:$0xff]
    %v238 = vld [vmem:[%s5 + $0x20] sm:$0xff]
    %v239 = vld [vmem:[%s5 + $0x28] sm:$0xff]
    %v240 = vld [vmem:[%s5 + $0x30] sm:$0xff]
    %v241 = vld [vmem:[%s5 + $0x38] sm:$0xff]
    %v242 = vld [vmem:[%s5 + $0x40] sm:$0xff]
    %v243 = vld [vmem:[%s5 + $0x48] sm:$0xff]
    %v244 = vld [vmem:[%s5 + $0x50] sm:$0xff]
    %v245 = vld [vmem:[%s5 + $0x58] sm:$0xff]
    %v246 = vld [vmem:[%s5 + $0x60] sm:$0xff]
    %v247 = vld [vmem:[%s5 + $0x68] sm:$0xff]
    %v248 = vld [vmem:[%s5 + $0x70] sm:$0xff]
    %v249 = vld [vmem:[%s5 + $0x78] sm:$0xff]
    %v250 = vld [vmem:[%s6] sm:$0x1]
    %v252 = vlaneseq
    %v253 = vshrl.u32 %v252, 7
    %v254 = vsub.s32 0, %v253
    %v255 = vrot.slane %v250, %v254
    %257 = vmatprep.subr.mxu0 0.0
    %258 = vmatpush1.msra.mxu0 %v249
    %259 = vmatprep.subr.mxu0 0.0
    %260 = vmatpush1.msra.mxu0 %v248
    %261 = vmatprep.subr.mxu0 0.0
    %262 = vmatpush1.msra.mxu0 %v247
    %263 = vmatprep.subr.mxu0 0.0
    %264 = vmatpush1.msra.mxu0 %v246
    %265 = vmatprep.subr.mxu0 0.0
    %266 = vmatpush1.msra.mxu0 %v245
    %267 = vmatprep.subr.mxu0 0.0
    %268 = vmatpush1.msra.mxu0 %v244
    %269 = vmatprep.subr.mxu0 0.0
    %270 = vmatpush1.msra.mxu0 %v243
    %271 = vmatprep.subr.mxu0 0.0
    %272 = vmatpush1.msra.mxu0 %v242
    %273 = vmatprep.subr.mxu0 0.0
    %274 = vmatpush1.msra.mxu0 %v241
    %275 = vmatprep.subr.mxu0 0.0
    %276 = vmatpush1.msra.mxu0 %v240
    %277 = vmatprep.subr.mxu0 0.0
    %278 = vmatpush1.msra.mxu0 %v239
    %279 = vmatprep.subr.mxu0 0.0
    %280 = vmatpush1.msra.mxu0 %v238
    %281 = vmatprep.subr.mxu0 0.0
    %282 = vmatpush1.msra.mxu0 %v237
    %283 = vmatprep.subr.mxu0 0.0
    %284 = vmatpush1.msra.mxu0 %v236
    %285 = vmatprep.subr.mxu0 0.0
    %286 = vmatpush1.msra.mxu0 %v235
    %287 = vmatprep.subr.mxu0 0.0
    %288 = vmatpush1.msra.mxu0 %v234
    %289 = vmatprep.subr.mxu0 0.0
    %290 = vmatpush2.msra.mxu0 0.0
    %291 = vmatprep.subr.mxu0 0.0
    %292 = vmatpush2.msra.mxu0 0.0
    %293 = vmatprep.subr.mxu0 0.0
    %294 = vmatpush2.msra.mxu0 0.0
    %295 = vmatprep.subr.mxu0 0.0
    %296 = vmatpush2.msra.mxu0 0.0
    %297 = vmatprep.subr.mxu0 0.0
    %298 = vmatpush2.msra.mxu0 0.0
    %299 = vmatprep.subr.mxu0 0.0
    %300 = vmatpush2.msra.mxu0 0.0
    %301 = vmatprep.subr.mxu0 0.0
    %302 = vmatpush2.msra.mxu0 0.0
    %303 = vmatprep.subr.mxu0 0.0
    %304 = vmatpush2.msra.mxu0 0.0
    %305 = vmatprep.subr.mxu0 0.0
    %306 = vmatpush2.msra.mxu0 0.0
    %307 = vmatprep.subr.mxu0 0.0
    %308 = vmatpush2.msra.mxu0 0.0
    %309 = vmatprep.subr.mxu0 0.0
    %310 = vmatpush2.msra.mxu0 0.0
    %311 = vmatprep.subr.mxu0 0.0
    %312 = vmatpush2.msra.mxu0 0.0
    %313 = vmatprep.subr.mxu0 0.0
    %314 = vmatpush2.msra.mxu0 0.0
    %315 = vmatprep.subr.mxu0 0.0
    %316 = vmatpush2.msra.mxu0 0.0
    %317 = vmatprep.subr.mxu0 0.0
    %318 = vmatpush2.msra.mxu0 0.0
    %319 = vmatprep.subr.mxu0 0.0
    %320 = vmatpush2.msra.mxu0 0.0
    %321 = vmatprep.mubr.f32.mxu0 0.0
    %322 = vmatmul.mubr.f32.gmra.mxu0 %v233
    %v323 = vpop.f32.mrf.mxu0
    %v324 = vadd.f32 %v255, %v323
    %v325 = vpop.f32.mrf.mxu0
    %326 = vdwg.mxu0
    %vm327 = vcmask 64512
    %v328 = vsel %vm327, %v324, -inf
    %329 = vmax.xlane.f32.xlu0 %v328
    %v330 = vpop.xlane.xlu0 %329
    %v331 = vsub.f32 %v324, %v330
    %v332 = vmul.f32 %v331, 1.442695
    %v333 = vpow.pop %v332
    %v334 = vsel %vm327, %v333, 0.0
    %335 = vadd.xlane.f32.xlu0 %v334
    %v336 = vpop.xlane.xlu0 %335
    %v337 = vlog2.pop %v336
    %v338 = vmul.f32 %v337, 0.6931472
    %v339 = vsub.f32 %v331, %v338
    %340 = vst.msk [vmem:[#allocation7] sm:$0xff] %vm327, %v339
    // Predicated region
    $region38: #{discrete_actor_log_probs.1} parent=1 // pred_check
      _
    $region39: #{discrete_actor_log_probs.1} parent=1 // pred_check_branch
      %342 = sbr.rel (0) target = $region41
    $region40: #{discrete_actor_log_probs.1} parent=1 // pred_region
      %s344 = ssub.s32 128, 128
      %345 = vsyncadd [#allocation4], %s344
      %s347 = sshll.u32 [#allocation7], 4
      %s348 = int_to_ptr.vmem [resolvable:$true] %s347
      %350 = dma.vmem_to_hbm [thread:$0]  %s348, 128, %s7, [#allocation4]
    $region41: #{discrete_actor_log_probs.1} parent=1 // pred_fallthru
      _
    // Predicated region
    $region42: #{discrete_actor_log_probs.1} parent=1 // pred_check
      _
    $region43: #{discrete_actor_log_probs.1} parent=1 // pred_check_branch
      %352 = sbr.rel (0) target = $region45
    $region44: #{discrete_actor_log_probs.1} parent=1 // pred_region
      %353 = dma.done [#allocation4], 128
    $region45: #{discrete_actor_log_probs.1} parent=1 // pred_fallthru
      _
    %354 = vsyncpa [#allocation3], 1
    %355 = vsyncpa [#allocation6], 1
    %356 = vsyncpa [#allocation4], 1

</llo_original>
